<compile_context>
chip_gen: v6e
topology: v6e:2x2x1
jax: 0.10.0
libtpu: 0.0.40
codegen_flags: <defaults>
</compile_context>

<pallas_src>
import functools

import numpy as np
import jax
import jax.numpy as jnp
from jax import lax
from jax.experimental import pallas as pl
from jax.experimental.pallas import tpu as pltpu


# irreps as a static list of (multiplicity, l, parity); parity=+1 -> 'e', -1 -> 'o'
IRREPS = [(8, 0, 1), (4, 1, -1), (2, 2, 1)]   # "8x0e + 4x1o + 2x2e" -> dim = 8 + 12 + 10 = 30

LANE = 128  # TPU lane width; scale/fold slabs are packed at this boundary


def irreps_meta(irreps):
    dim = sum(mul * (2 * l + 1) for mul, l, _ in irreps)
    num_features = sum(mul for mul, _, _ in irreps)
    num_scalar = sum(mul for mul, l, p in irreps if l == 0 and p == 1)
    return dim, num_features, num_scalar


def build_static_matrices(irreps):
    """A: (dim, F) maps per-column squared means -> per-irrep component mean (pow(2).mean(-1)).
       E: (F, dim) broadcasts a per-irrep scale back to the flattened feature columns.
       scalar_segments: list of (col_start, mul) for l==0, p==+1 segments.
    """
    dim, num_features, _ = irreps_meta(irreps)
    A = np.zeros((dim, num_features), np.float32)
    E = np.zeros((num_features, dim), np.float32)
    scalar_segments = []
    ix, feat = 0, 0
    for mul, l, p in irreps:
        d = 2 * l + 1
        for m in range(mul):
            A[ix + m * d: ix + (m + 1) * d, feat + m] = 1.0 / d
            E[feat + m, ix + m * d: ix + (m + 1) * d] = 1.0
        if l == 0 and p == 1:
            scalar_segments.append((ix, mul))
        ix += mul * d
        feat += mul
    assert ix == dim
    return A, E, scalar_segments


# --------------------------------------------------------------------------------------
# In-kernel helpers
# --------------------------------------------------------------------------------------
def _onehot(ids, G):
    """(TILE_N, 1) int32 graph ids -> (TILE_N, G) f32 one-hot (zero row for ids == G)."""
    iota = lax.broadcasted_iota(jnp.int32, (ids.shape[0], G), 1)
    return (iota == ids).astype(jnp.float32)


def _finalize(s1, s2, invc, A, Ew, shift, bias, eps):
    """Per-graph raw sums -> (scale_cols, fold_cols), each (G, dim)."""
    m = s1 * invc                                  # (G, dim) per-graph column means
    ex2 = s2 * invc                                # (G, dim) per-graph second moments
    # centered second moment: E[(x - s*m)^2] = E[x^2] - m^2*(2s - s^2)  (s=0 => E[x^2])
    var_cols = ex2 - (m * m) * (2.0 * shift - shift * shift)
    norms = jnp.dot(var_cols, A, preferred_element_type=jnp.float32)          # (G, F)
    scale_cols = jnp.dot(lax.rsqrt(norms + eps), Ew,
                         preferred_element_type=jnp.float32)                  # (G, dim)
    center_cols = m * shift
    fold_cols = bias - center_cols * scale_cols    # out = x*scale + fold (one-hot rows)
    return scale_cols, fold_cols


# --------------------------------------------------------------------------------------
# Fused single-tile kernel (x read from HBM exactly once, single launch)
# --------------------------------------------------------------------------------------
def fused_kernel(ids_ref, x_ref, invc_ref, A_ref, Ew_ref, sb_ref, out_ref, *,
                 G, dim, eps):
    x = x_ref[...]                                 # (n_pad, dim) f32
    oh = _onehot(ids_ref[...], G)                  # (n_pad, G)
    cdims = (((0,), (0,)), ((), ()))               # contract the N axis
    s1 = lax.dot_general(oh, x, cdims, preferred_element_type=jnp.float32)      # (G, dim)
    s2 = lax.dot_general(oh, x * x, cdims, preferred_element_type=jnp.float32)  # (G, dim)
    sb = sb_ref[...]                               # (2, dim): row0=shift, row1=bias
    scale_cols, fold_cols = _finalize(s1, s2, invc_ref[...], A_ref[...], Ew_ref[...],
                                      sb[0:1, :], sb[1:2, :], eps)
    scale_n = jnp.dot(oh, scale_cols, preferred_element_type=jnp.float32)       # (n_pad, dim)
    fold_n = jnp.dot(oh, fold_cols, preferred_element_type=jnp.float32)         # (n_pad, dim)
    out_ref[...] = x * scale_n + fold_n


# --------------------------------------------------------------------------------------
# Pass 1 (tiled path): per-graph raw sums over N tiles + finalize packed [scale|fold]
# --------------------------------------------------------------------------------------
def stats_kernel(ids_ref, x_ref, invc_ref, A_ref, Ew_ref, sb_ref, sf_ref,
                 s1_ref, s2_ref, *, G, dim, eps):
    i = pl.program_id(0)

    @pl.when(i == 0)
    def _():
        s1_ref[...] = jnp.zeros_like(s1_ref)
        s2_ref[...] = jnp.zeros_like(s2_ref)

    x = x_ref[...]                                 # (TILE_N, dim)
    oh = _onehot(ids_ref[...], G)                  # (TILE_N, G) built in-kernel (no HBM one-hot)
    cdims = (((0,), (0,)), ((), ()))
    s1_ref[...] += lax.dot_general(oh, x, cdims, preferred_element_type=jnp.float32)
    s2_ref[...] += lax.dot_general(oh, x * x, cdims, preferred_element_type=jnp.float32)

    @pl.when(i == pl.num_programs(0) - 1)
    def _():
        sb = sb_ref[...]
        scale_cols, fold_cols = _finalize(s1_ref[...], s2_ref[...], invc_ref[...],
                                          A_ref[...], Ew_ref[...],
                                          sb[0:1, :], sb[1:2, :], eps)
        # pack [scale | fold] at the lane-128 boundary so pass 2 needs a single matmul
        sf_ref[...] = jnp.zeros_like(sf_ref)
        sf_ref[:, 0:dim] = scale_cols
        sf_ref[:, LANE:LANE + dim] = fold_cols


# --------------------------------------------------------------------------------------
# Pass 2 (tiled path): out = x * scale[batch] + fold[batch]   (one matmul + one FMA store)
# --------------------------------------------------------------------------------------
def apply_kernel(ids_ref, x_ref, sf_ref, out_ref, *, G, dim):
    oh = _onehot(ids_ref[...], G)                                              # (TILE_N, G)
    res = jnp.dot(oh, sf_ref[...], preferred_element_type=jnp.float32)         # (TILE_N, 2*LANE)
    out_ref[...] = x_ref[...] * res[:, 0:dim] + res[:, LANE:LANE + dim]


# --------------------------------------------------------------------------------------
# Wrapper
# --------------------------------------------------------------------------------------
def equivariant_graph_norm(node_input, batch, num_graphs, mean_shift, affine_weight,
                           affine_bias, *, irreps=IRREPS, eps=1e-5):
    N, dim = node_input.shape
    dim_ck, num_features, num_scalar = irreps_meta(irreps)
    assert dim == dim_ck
    assert dim <= LANE  # TODO(synk): for irreps.dim > 128, round the packed slab width up to a lane multiple.
    A, E, scalar_segments = build_static_matrices(irreps)
    G = int(num_graphs)

    # ---- node counts on the host (segment sum); guard empty graphs (no 1/0 -> NaN) ----
    batch_i = jnp.asarray(batch, jnp.int32)
    counts = jnp.zeros((G,), jnp.float32).at[batch_i].add(1.0)
    invc = jnp.where(counts > 0.0, 1.0 / counts, 0.0).reshape(G, 1)

    # ---- tiling over N: big tiles; collapse to a single fused call when possible ----
    TILE_N_MAX = 1024          # 512-2048 sweet spot; lane-padded VMEM stays few-MiB, v7x-safe
    n8 = max(8, ((N + 7) // 8) * 8)
    TILE_N = n8 if n8 <= TILE_N_MAX else TILE_N_MAX
    n_pad = ((N + TILE_N - 1) // TILE_N) * TILE_N
    num_tiles = n_pad // TILE_N

    x = jnp.asarray(node_input, jnp.float32)
    ids = batch_i.reshape(N, 1)
    if n_pad != N:
        x = jnp.pad(x, ((0, n_pad - N), (0, 0)))
        ids = jnp.pad(ids, ((0, n_pad - N), (0, 0)), constant_values=G)  # OOB id -> zero one-hot row

    # ---- constants: fold affine_weight into E; pack mean_shift / bias into one (2, dim) ----
    ms = jnp.asarray(mean_shift, jnp.float32)
    bb = jnp.asarray(affine_bias, jnp.float32)
    shift_cols = jnp.zeros((dim,), jnp.float32)
    bias_cols = jnp.zeros((dim,), jnp.float32)
    off = 0
    for col, mul in scalar_segments:
        shift_cols = shift_cols.at[col:col + mul].set(ms[off:off + mul])
        bias_cols = bias_cols.at[col:col + mul].set(bb[off:off + mul])
        off += mul
    sb_j = jnp.stack([shift_cols, bias_cols], axis=0)                                   # (2, dim)
    A_j = jnp.asarray(A)                                                                # (dim, F)
    Ew_j = jnp.asarray(affine_weight, jnp.float32).reshape(num_features, 1) * jnp.asarray(E)  # (F, dim)

    vmem = pltpu.MemorySpace.VMEM

    def full_spec(shape):
        return pl.BlockSpec(shape, lambda i: (0, 0), memory_space=vmem)

    common = dict(G=G, dim=dim)
    VMEM_LIMIT = 32 * 1024 * 1024   # safe on v5e/v6e (128 MiB) and v7x (64 MiB) alike

    # ---------------- fused single-tile fast path ----------------
    if num_tiles == 1:
        out = pl.pallas_call(
            functools.partial(fused_kernel, eps=eps, **common),
            out_shape=jax.ShapeDtypeStruct((n_pad, dim), jnp.float32),
            grid_spec=pltpu.PrefetchScalarGridSpec(
                num_scalar_prefetch=0, grid=(1,),
                in_specs=[
                    full_spec((n_pad, 1)),             # batch ids (int32)
                    full_spec((n_pad, dim)),           # x
                    full_spec((G, 1)),                 # 1/count (0 for empty graphs)
                    full_spec((dim, num_features)),    # A
                    full_spec((num_features, dim)),    # E with affine_weight folded in
                    full_spec((2, dim)),               # [mean_shift; bias] columns
                ],
                out_specs=full_spec((n_pad, dim))),
            compiler_params=pltpu.CompilerParams(
                dimension_semantics=("arbitrary",),
                vmem_limit_bytes=VMEM_LIMIT),
            cost_estimate=pl.CostEstimate(
                flops=8 * n_pad * G * dim + 5 * n_pad * dim + 4 * G * dim * num_features,
                transcendentals=G * num_features,
                bytes_accessed=(2 * n_pad * dim + n_pad + 4 * G * dim) * 4),
        )(ids, x, invc, A_j, Ew_j, sb_j)
        return out[:N]

    # ---------------- pass 1: per-graph stats + finalize packed [scale | fold] ----------------
    sf = pl.pallas_call(
        functools.partial(stats_kernel, eps=eps, **common),
        out_shape=jax.ShapeDtypeStruct((G, 2 * LANE), jnp.float32),
        grid_spec=pltpu.PrefetchScalarGridSpec(
            num_scalar_prefetch=0, grid=(num_tiles,),
            in_specs=[
                pl.BlockSpec((TILE_N, 1), lambda i: (i, 0), memory_space=vmem),    # batch ids
                pl.BlockSpec((TILE_N, dim), lambda i: (i, 0), memory_space=vmem),  # x
                full_spec((G, 1)),                                                 # invc
                full_spec((dim, num_features)),                                    # A
                full_spec((num_features, dim)),                                    # Ew
                full_spec((2, dim)),                                               # shift/bias
            ],
            out_specs=full_spec((G, 2 * LANE)),
            scratch_shapes=[pltpu.VMEM((G, dim), jnp.float32),
                            pltpu.VMEM((G, dim), jnp.float32)]),
        compiler_params=pltpu.CompilerParams(
            dimension_semantics=("arbitrary",),
            vmem_limit_bytes=VMEM_LIMIT),
        cost_estimate=pl.CostEstimate(
            flops=4 * n_pad * G * dim + 3 * n_pad * dim + 4 * G * dim * num_features,
            transcendentals=G * num_features,
            bytes_accessed=(n_pad * dim + n_pad + 2 * G * LANE) * 4),
    )(ids, x, invc, A_j, Ew_j, sb_j)

    # ---------------- pass 2: apply (parallel over N tiles, one matmul + FMA store) ----------------
    out = pl.pallas_call(
        functools.partial(apply_kernel, **common),
        out_shape=jax.ShapeDtypeStruct((n_pad, dim), jnp.float32),
        grid_spec=pltpu.PrefetchScalarGridSpec(
            num_scalar_prefetch=0, grid=(num_tiles,),
            in_specs=[
                pl.BlockSpec((TILE_N, 1), lambda i: (i, 0), memory_space=vmem),    # batch ids
                pl.BlockSpec((TILE_N, dim), lambda i: (i, 0), memory_space=vmem),  # x
                full_spec((G, 2 * LANE)),                                          # [scale | fold]
            ],
            out_specs=pl.BlockSpec((TILE_N, dim), lambda i: (i, 0), memory_space=vmem)),
        compiler_params=pltpu.CompilerParams(
            dimension_semantics=("parallel",),
            vmem_limit_bytes=VMEM_LIMIT),
        cost_estimate=pl.CostEstimate(
            flops=4 * n_pad * G * LANE + 2 * n_pad * dim,
            transcendentals=0,
            bytes_accessed=(2 * n_pad * dim + n_pad + 2 * G * LANE) * 4),
    )(ids, x, sf)

    return out[:N]


# --------------------------------------------------------------------------------------
# Pure-JAX reference (port of the PyTorch forward; reduce='mean', normalization='component')
# --------------------------------------------------------------------------------------
def reference_forward(x, batch, num_graphs, mean_shift, weight, bias, *, irreps=IRREPS, eps=1e-5):
    N = x.shape[0]
    counts = jnp.zeros((num_graphs,), jnp.float32).at[batch].add(1.0)
    fields = []
    ix = iw = ib = ims = 0
    for mul, l, p in irreps:
        d = 2 * l + 1
        field = x[:, ix:ix + mul * d].reshape(N, mul, d)
        ix += mul * d
        if l == 0 and p == 1:
            fsum = jnp.zeros((num_graphs, mul, d), jnp.float32).at[batch].add(field)
            fmean = fsum / counts[:, None, None]
            field = field - fmean[batch] * mean_shift[ims:ims + mul].reshape(1, mul, 1)
            ims += mul
        fnorm = jnp.mean(field ** 2, axis=-1)                                   # component
        pooled = jnp.zeros((num_graphs, mul), jnp.float32).at[batch].add(fnorm) / counts[:, None]
        fnorm_g = lax.rsqrt(pooled + eps) * weight[iw:iw + mul][None]
        iw += mul
        field = field * fnorm_g[batch][:, :, None]
        if d == 1 and p == 1:
            field = field + bias[ib:ib + mul].reshape(1, mul, 1)
            ib += mul
        fields.append(field.reshape(N, mul * d))
    return jnp.concatenate(fields, axis=-1)


if __name__ == "__main__":
    key = jax.random.PRNGKey(0)
    k1, k2, k3, k4, k5, k6 = jax.random.split(key, 6)

    dim, num_features, num_scalar = irreps_meta(IRREPS)   # 30, 14, 8

    # parameters (__init__ shapes: mean_shift (num_scalar,), weight (num_features,), bias (num_scalar,))
    mean_shift = 1.0 + 0.1 * jax.random.normal(k2, (num_scalar,), jnp.float32)
    affine_weight = 1.0 + 0.1 * jax.random.normal(k3, (num_features,), jnp.float32)
    affine_bias = 0.1 * jax.random.normal(k4, (num_scalar,), jnp.float32)

    # ---- test 1: small N -> fused single-tile path; graph 1 is intentionally EMPTY ----
    N1, G1 = 16, 3
    x1 = jax.random.normal(k1, (N1, dim), jnp.float32)
    batch1 = jnp.array([0] * 9 + [2] * 7, dtype=jnp.int32)      # uneven sizes, graph 1 empty
    out1 = jax.block_until_ready(
        equivariant_graph_norm(x1, batch1, G1, mean_shift, affine_weight, affine_bias))
    ref1 = jax.block_until_ready(
        reference_forward(x1, batch1, G1, mean_shift, affine_weight, affine_bias))
    assert out1.shape == (N1, dim) and out1.dtype == jnp.float32
    np.testing.assert_allclose(np.asarray(out1), np.asarray(ref1), rtol=1e-3, atol=1e-4)

    # ---- test 2: larger N -> exercises the tiled two-pass path (multi-tile accumulation) ----
    N2, G2 = 2500, 4
    x2 = jax.random.normal(k5, (N2, dim), jnp.float32)
    batch2 = jax.random.randint(k6, (N2,), 0, G2, dtype=jnp.int32)
    out2 = jax.block_until_ready(
        equivariant_graph_norm(x2, batch2, G2, mean_shift, affine_weight, affine_bias))
    ref2 = jax.block_until_ready(
        reference_forward(x2, batch2, G2, mean_shift, affine_weight, affine_bias))
    assert out2.shape == (N2, dim) and out2.dtype == jnp.float32
    np.testing.assert_allclose(np.asarray(out2), np.asarray(ref2), rtol=1e-3, atol=1e-4)

    print("KERNEL_OK")
</pallas_src>

<mosaic_0001>
module attributes {stable_mosaic.version = 11 : i64} {
  func.func @fused_kernel(%arg0: i32, %arg1: memref<16x1xi32, #tpu.memory_space<vmem>>, %arg2: memref<16x30xf32, #tpu.memory_space<vmem>>, %arg3: memref<3x1xf32, #tpu.memory_space<vmem>>, %arg4: memref<30x14xf32, #tpu.memory_space<vmem>>, %arg5: memref<14x30xf32, #tpu.memory_space<vmem>>, %arg6: memref<2x30xf32, #tpu.memory_space<vmem>>, %arg7: memref<16x30xf32, #tpu.memory_space<vmem>>) attributes {dimension_semantics = [#tpu.dimension_semantics<arbitrary>], iteration_bounds = array<i64: 1>, scalar_prefetch = 0 : i64, scratch_operands = 0 : i64, tpu.core_type = #tpu.core_type<tc>, window_params = [{pipeline_mode = #tpu.pipeline_mode<synchronous>, transform_indices = @transform_0, window_bounds = array<i64: 16, 1>}, {pipeline_mode = #tpu.pipeline_mode<synchronous>, transform_indices = @transform_1, window_bounds = array<i64: 16, 30>}, {pipeline_mode = #tpu.pipeline_mode<synchronous>, transform_indices = @transform_2, window_bounds = array<i64: 3, 1>}, {pipeline_mode = #tpu.pipeline_mode<synchronous>, transform_indices = @transform_3, window_bounds = array<i64: 30, 14>}, {pipeline_mode = #tpu.pipeline_mode<synchronous>, transform_indices = @transform_4, window_bounds = array<i64: 14, 30>}, {pipeline_mode = #tpu.pipeline_mode<synchronous>, transform_indices = @transform_5, window_bounds = array<i64: 2, 30>}, {pipeline_mode = #tpu.pipeline_mode<synchronous>, transform_indices = @transform_6, window_bounds = array<i64: 16, 30>}]} {
    %c0 = arith.constant 0 : index
    %c0_0 = arith.constant 0 : index
    %0 = vector.load %arg2[%c0, %c0_0] : memref<16x30xf32, #tpu.memory_space<vmem>>, vector<16x30xf32>
    %c0_1 = arith.constant 0 : index
    %c0_2 = arith.constant 0 : index
    %1 = vector.load %arg1[%c0_1, %c0_2] : memref<16x1xi32, #tpu.memory_space<vmem>>, vector<16x1xi32>
    %2 = tpu.iota {dimensions = array<i32: 1>} : vector<16x3xi32>
    %3 = vector.broadcast %1 : vector<16x1xi32> to vector<16x3xi32>
    %4 = arith.cmpi eq, %2, %3 : vector<16x3xi32>
    %5 = arith.extui %4 : vector<16x3xi1> to vector<16x3xi32>
    %6 = arith.sitofp %5 : vector<16x3xi32> to vector<16x3xf32>
    %cst = arith.constant dense<0.000000e+00> : vector<3x30xf32>
    %7 = tpu.matmul %6, %0, %cst {dimension_numbers = #tpu.dot_dimension_numbers<[0], [0], [1], [1], [0, 1, 1, 1], [], []>} : vector<16x3xf32>, vector<16x30xf32>, vector<3x30xf32> -> vector<3x30xf32>
    %8 = arith.mulf %0, %0 : vector<16x30xf32>
    %cst_3 = arith.constant dense<0.000000e+00> : vector<3x30xf32>
    %9 = tpu.matmul %6, %8, %cst_3 {dimension_numbers = #tpu.dot_dimension_numbers<[0], [0], [1], [1], [0, 1, 1, 1], [], []>} : vector<16x3xf32>, vector<16x30xf32>, vector<3x30xf32> -> vector<3x30xf32>
    %c0_4 = arith.constant 0 : index
    %c0_5 = arith.constant 0 : index
    %10 = vector.load %arg6[%c0_4, %c0_5] : memref<2x30xf32, #tpu.memory_space<vmem>>, vector<2x30xf32>
    %c0_6 = arith.constant 0 : index
    %c0_7 = arith.constant 0 : index
    %11 = vector.load %arg3[%c0_6, %c0_7] : memref<3x1xf32, #tpu.memory_space<vmem>>, vector<3x1xf32>
    %c0_8 = arith.constant 0 : index
    %c0_9 = arith.constant 0 : index
    %12 = vector.load %arg4[%c0_8, %c0_9] : memref<30x14xf32, #tpu.memory_space<vmem>>, vector<30x14xf32>
    %c0_10 = arith.constant 0 : index
    %c0_11 = arith.constant 0 : index
    %13 = vector.load %arg5[%c0_10, %c0_11] : memref<14x30xf32, #tpu.memory_space<vmem>>, vector<14x30xf32>
    %14 = vector.extract_strided_slice %10 {offsets = [0, 0], sizes = [1, 30], strides = [1, 1]} : vector<2x30xf32> to vector<1x30xf32>
    %15 = vector.extract_strided_slice %10 {offsets = [1, 0], sizes = [1, 30], strides = [1, 1]} : vector<2x30xf32> to vector<1x30xf32>
    %16 = vector.broadcast %11 : vector<3x1xf32> to vector<3x30xf32>
    %17 = arith.mulf %7, %16 : vector<3x30xf32>
    %18 = vector.broadcast %11 : vector<3x1xf32> to vector<3x30xf32>
    %19 = arith.mulf %9, %18 : vector<3x30xf32>
    %20 = arith.mulf %17, %17 : vector<3x30xf32>
    %cst_12 = arith.constant 2.000000e+00 : f32
    %21 = vector.broadcast %cst_12 : f32 to vector<1x30xf32>
    %22 = arith.mulf %21, %14 : vector<1x30xf32>
    %23 = arith.mulf %14, %14 : vector<1x30xf32>
    %24 = arith.subf %22, %23 : vector<1x30xf32>
    %25 = vector.broadcast %24 : vector<1x30xf32> to vector<3x30xf32>
    %26 = arith.mulf %20, %25 : vector<3x30xf32>
    %27 = arith.subf %19, %26 : vector<3x30xf32>
    %cst_13 = arith.constant dense<0.000000e+00> : vector<3x14xf32>
    %28 = tpu.matmul %27, %12, %cst_13 {dimension_numbers = #tpu.dot_dimension_numbers<[1], [0], [0], [1], [0, 0, 1, 1], [], []>} : vector<3x30xf32>, vector<30x14xf32>, vector<3x14xf32> -> vector<3x14xf32>
    %cst_14 = arith.constant 9.99999974E-6 : f32
    %29 = vector.broadcast %cst_14 : f32 to vector<3x14xf32>
    %30 = arith.addf %28, %29 : vector<3x14xf32>
    %31 = math.rsqrt %30 : vector<3x14xf32>
    %cst_15 = arith.constant dense<0.000000e+00> : vector<3x30xf32>
    %32 = tpu.matmul %31, %13, %cst_15 {dimension_numbers = #tpu.dot_dimension_numbers<[1], [0], [0], [1], [0, 0, 1, 1], [], []>} : vector<3x14xf32>, vector<14x30xf32>, vector<3x30xf32> -> vector<3x30xf32>
    %33 = vector.broadcast %14 : vector<1x30xf32> to vector<3x30xf32>
    %34 = arith.mulf %17, %33 : vector<3x30xf32>
    %35 = arith.mulf %34, %32 : vector<3x30xf32>
    %36 = vector.broadcast %15 : vector<1x30xf32> to vector<3x30xf32>
    %37 = arith.subf %36, %35 : vector<3x30xf32>
    %cst_16 = arith.constant dense<0.000000e+00> : vector<16x30xf32>
    %38 = tpu.matmul %6, %32, %cst_16 {dimension_numbers = #tpu.dot_dimension_numbers<[1], [0], [0], [1], [0, 0, 1, 1], [], []>} : vector<16x3xf32>, vector<3x30xf32>, vector<16x30xf32> -> vector<16x30xf32>
    %cst_17 = arith.constant dense<0.000000e+00> : vector<16x30xf32>
    %39 = tpu.matmul %6, %37, %cst_17 {dimension_numbers = #tpu.dot_dimension_numbers<[1], [0], [0], [1], [0, 0, 1, 1], [], []>} : vector<16x3xf32>, vector<3x30xf32>, vector<16x30xf32> -> vector<16x30xf32>
    %40 = arith.mulf %0, %38 : vector<16x30xf32>
    %41 = arith.addf %40, %39 : vector<16x30xf32>
    %c0_18 = arith.constant 0 : index
    %c0_19 = arith.constant 0 : index
    %42 = vector.load %arg7[%c0_18, %c0_19] : memref<16x30xf32, #tpu.memory_space<vmem>>, vector<16x30xf32>
    tpu.vector_store %arg7[%c0_18, %c0_19], %41 {strides = array<i32>} : memref<16x30xf32, #tpu.memory_space<vmem>>, vector<16x30xf32>,
    return
  }
  func.func @transform_0(%arg0: i32) -> (i32, i32) {
    %c0_i32 = arith.constant 0 : i32
    %c0_i32_0 = arith.constant 0 : i32
    %c0_i32_1 = arith.constant 0 : i32
    return %c0_i32, %c0_i32_0 : i32, i32
  }
  func.func @transform_1(%arg0: i32) -> (i32, i32) {
    %c0_i32 = arith.constant 0 : i32
    %c0_i32_0 = arith.constant 0 : i32
    %c0_i32_1 = arith.constant 0 : i32
    return %c0_i32, %c0_i32_0 : i32, i32
  }
  func.func @transform_2(%arg0: i32) -> (i32, i32) {
    %c0_i32 = arith.constant 0 : i32
    %c0_i32_0 = arith.constant 0 : i32
    %c0_i32_1 = arith.constant 0 : i32
    return %c0_i32, %c0_i32_0 : i32, i32
  }
  func.func @transform_3(%arg0: i32) -> (i32, i32) {
    %c0_i32 = arith.constant 0 : i32
    %c0_i32_0 = arith.constant 0 : i32
    %c0_i32_1 = arith.constant 0 : i32
    return %c0_i32, %c0_i32_0 : i32, i32
  }
  func.func @transform_4(%arg0: i32) -> (i32, i32) {
    %c0_i32 = arith.constant 0 : i32
    %c0_i32_0 = arith.constant 0 : i32
    %c0_i32_1 = arith.constant 0 : i32
    return %c0_i32, %c0_i32_0 : i32, i32
  }
  func.func @transform_5(%arg0: i32) -> (i32, i32) {
    %c0_i32 = arith.constant 0 : i32
    %c0_i32_0 = arith.constant 0 : i32
    %c0_i32_1 = arith.constant 0 : i32
    return %c0_i32, %c0_i32_0 : i32, i32
  }
  func.func @transform_6(%arg0: i32) -> (i32, i32) {
    %c0_i32 = arith.constant 0 : i32
    %c0_i32_0 = arith.constant 0 : i32
    %c0_i32_1 = arith.constant 0 : i32
    return %c0_i32, %c0_i32_0 : i32, i32
  }
}

</mosaic_0001>

<llo_original>
// kernel: tpu_custom_call.1
$region0: #{tpu_custom_call.1}
  #allocation0 [shape = 'u32[]', space=smem, size = 0x4, offset = 0x4, fixed_abs, tag = 'smem constant byte address 0x4 - core index']
  #allocation1 [shape = 'u32[144,128]{1,0:T(1,128)}', space=vmem, size = 0x12000, scoped, tag = 'internal scratch']
  %s0 = inlined_call_operand.vmem [shape: s32[16,1], index: 0, kind: input, shape index: {}]
  %s1 = inlined_call_operand.vmem [shape: f32[16,30], index: 1, kind: input, shape index: {}]
  %s2 = inlined_call_operand.vmem [shape: f32[3,1], index: 2, kind: input, shape index: {}]
  %s3 = inlined_call_operand.vmem [shape: f32[30,14], index: 3, kind: input, shape index: {}]
  %s4 = inlined_call_operand.vmem [shape: f32[14,30], index: 4, kind: input, shape index: {}]
  %s5 = inlined_call_operand.vmem [shape: f32[2,30], index: 5, kind: input, shape index: {}]
  %s6 = inlined_call_operand.hbm [shape: f32[16,30], index: 6, kind: output, shape index: {}]
  %s7 = sld [smem:[#allocation0]]
  $region34: #{tpu_custom_call.1} parent=0
    _
  %s9 = ssub.s32 1, %s7
  %s10 = scalar_select 0, %s9, %s7
  $region1: #{tpu_custom_call.1} parent=0
    #allocation2 [shape = 'u8[8192]{0}', space=vmem, size = 0x2000, scoped, tag = 'output window, operand 0, single buffered']
    #allocation3 [shape = 's32[1]{0}', space=sflag, size = 0x4, scoped, tag = 'scoped memory for tpu_custom_call.1']
    %11 = vsyncpa [#allocation3], 0
    // Predicated region
    $region2: #{tpu_custom_call.1} parent=1 // pred_check
      _
    $region3: #{tpu_custom_call.1} parent=1 // pred_check_branch
      %13 = sbr.rel (0) target = $region5
    $region4: #{tpu_custom_call.1} parent=1 // pred_region
      _
    $region5: #{tpu_custom_call.1} parent=1 // pred_fallthru
      _
    // Predicated region
    $region6: #{tpu_custom_call.1} parent=1 // pred_check
      _
    $region7: #{tpu_custom_call.1} parent=1 // pred_check_branch
      %15 = sbr.rel (0) target = $region9
    $region8: #{tpu_custom_call.1} parent=1 // pred_region
      _
    $region9: #{tpu_custom_call.1} parent=1 // pred_fallthru
      _
    // Predicated region
    $region10: #{tpu_custom_call.1} parent=1 // pred_check
      _
    $region11: #{tpu_custom_call.1} parent=1 // pred_check_branch
      %17 = sbr.rel (0) target = $region13
    $region12: #{tpu_custom_call.1} parent=1 // pred_region
      _
    $region13: #{tpu_custom_call.1} parent=1 // pred_fallthru
      _
    // Predicated region
    $region14: #{tpu_custom_call.1} parent=1 // pred_check
      _
    $region15: #{tpu_custom_call.1} parent=1 // pred_check_branch
      %19 = sbr.rel (0) target = $region17
    $region16: #{tpu_custom_call.1} parent=1 // pred_region
      _
    $region17: #{tpu_custom_call.1} parent=1 // pred_fallthru
      _
    // Predicated region
    $region18: #{tpu_custom_call.1} parent=1 // pred_check
      _
    $region19: #{tpu_custom_call.1} parent=1 // pred_check_branch
      %21 = sbr.rel (0) target = $region21
    $region20: #{tpu_custom_call.1} parent=1 // pred_region
      _
    $region21: #{tpu_custom_call.1} parent=1 // pred_fallthru
      _
    // Predicated region
    $region22: #{tpu_custom_call.1} parent=1 // pred_check
      _
    $region23: #{tpu_custom_call.1} parent=1 // pred_check_branch
      %23 = sbr.rel (0) target = $region25
    $region24: #{tpu_custom_call.1} parent=1 // pred_region
      _
    $region25: #{tpu_custom_call.1} parent=1 // pred_fallthru
      _
    %v24 = vld [vmem:[%s1] sm:$0xff]
    %v25 = vld [vmem:[%s1 + $0x8] sm:$0xff]
    %v26 = vld [vmem:[%s0] sm:$0xff]
    %v27 = vld [vmem:[%s0 + $0x8] sm:$0xff]
    %v28 = vlaneseq
    %v29 = vand.u32 %v28, 127
    %30 = vset.pattern.permute.xlu0 0
    %31 = vperm.xlu0 %30, %v26
    %v32 = vpop.permute.xlu0 %31
    %33 = vset.pattern.permute.xlu0 0
    %34 = vperm.xlu0 %33, %v27
    %v35 = vpop.permute.xlu0 %34
    %vm36 = vcmp.eq.s32.totalorder %v29, %v32
    %vm37 = vcmp.eq.s32.totalorder %v29, %v35
    %v38 = vsel %vm36, 1, 0
    %v39 = vsel %vm37, 1, 0
    %v40 = vcvt.s32.f32 %v38
    %v41 = vcvt.s32.f32 %v39
    %42 = vxpose.xlu0.b32.start [1/16] %v40, 128
    %43 = vxpose.xlu0.b32.cont [2/16] %v41, 128
    %44 = vxpose.xlu0.b32.cont [3/16] 0.0, 128
    %45 = vxpose.xlu0.b32.cont [4/16] 0.0, 128
    %46 = vxpose.xlu0.b32.cont [5/16] 0.0, 128
    %47 = vxpose.xlu0.b32.cont [6/16] 0.0, 128
    %48 = vxpose.xlu0.b32.cont [7/16] 0.0, 128
    %49 = vxpose.xlu0.b32.cont [8/16] 0.0, 128
    %50 = vxpose.xlu0.b32.cont [9/16] 0.0, 128
    %51 = vxpose.xlu0.b32.cont [10/16] 0.0, 128
    %52 = vxpose.xlu0.b32.cont [11/16] 0.0, 128
    %53 = vxpose.xlu0.b32.cont [12/16] 0.0, 128
    %54 = vxpose.xlu0.b32.cont [13/16] 0.0, 128
    %55 = vxpose.xlu0.b32.cont [14/16] 0.0, 128
    %56 = vxpose.xlu0.b32.cont [15/16] 0.0, 128
    %57 = vxpose.xlu0.b32.end [16/16] 0.0, 128
    %v58 = vpop.trf.xlu0
    %v59 = vpop.trf.xlu0
    %v60 = vpop.trf.xlu0
    %v61 = vpop.trf.xlu0
    %v62 = vpop.trf.xlu0
    %v63 = vpop.trf.xlu0
    %v64 = vpop.trf.xlu0
    %v65 = vpop.trf.xlu0
    %v66 = vpop.trf.xlu0
    %v67 = vpop.trf.xlu0
    %v68 = vpop.trf.xlu0
    %v69 = vpop.trf.xlu0
    %v70 = vpop.trf.xlu0
    %v71 = vpop.trf.xlu0
    %v72 = vpop.trf.xlu0
    %v73 = vpop.trf.xlu0
    %vm74 = vcmask 130048
    %v76 = vsel %vm74, %v58, 0
    %78 = vmatprep.subr.mxu0 0.0
    %79 = vmatpush1.msra.mxu0 0.0
    %80 = vmatprep.subr.mxu0 0.0
    %81 = vmatpush1.msra.mxu0 0.0
    %82 = vmatprep.subr.mxu0 0.0
    %83 = vmatpush1.msra.mxu0 0.0
    %84 = vmatprep.subr.mxu0 0.0
    %85 = vmatpush1.msra.mxu0 0.0
    %86 = vmatprep.subr.mxu0 0.0
    %87 = vmatpush1.msra.mxu0 0.0
    %88 = vmatprep.subr.mxu0 0.0
    %89 = vmatpush1.msra.mxu0 0.0
    %90 = vmatprep.subr.mxu0 0.0
    %91 = vmatpush1.msra.mxu0 0.0
    %92 = vmatprep.subr.mxu0 0.0
    %93 = vmatpush1.msra.mxu0 0.0
    %94 = vmatprep.subr.mxu0 0.0
    %95 = vmatpush1.msra.mxu0 0.0
    %96 = vmatprep.subr.mxu0 0.0
    %97 = vmatpush1.msra.mxu0 0.0
    %98 = vmatprep.subr.mxu0 0.0
    %99 = vmatpush1.msra.mxu0 0.0
    %100 = vmatprep.subr.mxu0 0.0
    %101 = vmatpush1.msra.mxu0 0.0
    %102 = vmatprep.subr.mxu0 0.0
    %103 = vmatpush1.msra.mxu0 0.0
    %104 = vmatprep.subr.mxu0 0.0
    %105 = vmatpush1.msra.mxu0 0.0
    %106 = vmatprep.subr.mxu0 0.0
    %107 = vmatpush1.msra.mxu0 %v25
    %108 = vmatprep.subr.mxu0 0.0
    %109 = vmatpush1.msra.mxu0 %v24
    %110 = vmatprep.subr.mxu0 0.0
    %111 = vmatpush2.msra.mxu0 0.0
    %112 = vmatprep.subr.mxu0 0.0
    %113 = vmatpush2.msra.mxu0 0.0
    %114 = vmatprep.subr.mxu0 0.0
    %115 = vmatpush2.msra.mxu0 0.0
    %116 = vmatprep.subr.mxu0 0.0
    %117 = vmatpush2.msra.mxu0 0.0
    %118 = vmatprep.subr.mxu0 0.0
    %119 = vmatpush2.msra.mxu0 0.0
    %120 = vmatprep.subr.mxu0 0.0
    %121 = vmatpush2.msra.mxu0 0.0
    %122 = vmatprep.subr.mxu0 0.0
    %123 = vmatpush2.msra.mxu0 0.0
    %124 = vmatprep.subr.mxu0 0.0
    %125 = vmatpush2.msra.mxu0 0.0
    %126 = vmatprep.subr.mxu0 0.0
    %127 = vmatpush2.msra.mxu0 0.0
    %128 = vmatprep.subr.mxu0 0.0
    %129 = vmatpush2.msra.mxu0 0.0
    %130 = vmatprep.subr.mxu0 0.0
    %131 = vmatpush2.msra.mxu0 0.0
    %132 = vmatprep.subr.mxu0 0.0
    %133 = vmatpush2.msra.mxu0 0.0
    %134 = vmatprep.subr.mxu0 0.0
    %135 = vmatpush2.msra.mxu0 0.0
    %136 = vmatprep.subr.mxu0 0.0
    %137 = vmatpush2.msra.mxu0 0.0
    %138 = vmatprep.subr.mxu0 0.0
    %139 = vmatpush2.msra.mxu0 0.0
    %140 = vmatprep.subr.mxu0 0.0
    %141 = vmatpush2.msra.mxu0 0.0
    %142 = vmatprep.mubr.f32.mxu0 0.0
    %143 = vmatmul.mubr.f32.gmra.mxu0 %v76
    %v144 = vpop.f32.mrf.mxu0
    %v145 = vadd.f32 0.0, %v144
    %v146 = vpop.f32.mrf.mxu0
    %147 = vdwg.mxu0
    %v148 = vmul.f32 %v24, %v24
    %v149 = vmul.f32 %v25, %v25
    %150 = vmatprep.subr.mxu0 0.0
    %151 = vmatpush1.msra.mxu0 0.0
    %152 = vmatprep.subr.mxu0 0.0
    %153 = vmatpush1.msra.mxu0 0.0
    %154 = vmatprep.subr.mxu0 0.0
    %155 = vmatpush1.msra.mxu0 0.0
    %156 = vmatprep.subr.mxu0 0.0
    %157 = vmatpush1.msra.mxu0 0.0
    %158 = vmatprep.subr.mxu0 0.0
    %159 = vmatpush1.msra.mxu0 0.0
    %160 = vmatprep.subr.mxu0 0.0
    %161 = vmatpush1.msra.mxu0 0.0
    %162 = vmatprep.subr.mxu0 0.0
    %163 = vmatpush1.msra.mxu0 0.0
    %164 = vmatprep.subr.mxu0 0.0
    %165 = vmatpush1.msra.mxu0 0.0
    %166 = vmatprep.subr.mxu0 0.0
    %167 = vmatpush1.msra.mxu0 0.0
    %168 = vmatprep.subr.mxu0 0.0
    %169 = vmatpush1.msra.mxu0 0.0
    %170 = vmatprep.subr.mxu0 0.0
    %171 = vmatpush1.msra.mxu0 0.0
    %172 = vmatprep.subr.mxu0 0.0
    %173 = vmatpush1.msra.mxu0 0.0
    %174 = vmatprep.subr.mxu0 0.0
    %175 = vmatpush1.msra.mxu0 0.0
    %176 = vmatprep.subr.mxu0 0.0
    %177 = vmatpush1.msra.mxu0 0.0
    %178 = vmatprep.subr.mxu0 0.0
    %179 = vmatpush1.msra.mxu0 %v149
    %180 = vmatprep.subr.mxu0 0.0
    %181 = vmatpush1.msra.mxu0 %v148
    %182 = vmatprep.subr.mxu0 0.0
    %183 = vmatpush2.msra.mxu0 0.0
    %184 = vmatprep.subr.mxu0 0.0
    %185 = vmatpush2.msra.mxu0 0.0
    %186 = vmatprep.subr.mxu0 0.0
    %187 = vmatpush2.msra.mxu0 0.0
    %188 = vmatprep.subr.mxu0 0.0
    %189 = vmatpush2.msra.mxu0 0.0
    %190 = vmatprep.subr.mxu0 0.0
    %191 = vmatpush2.msra.mxu0 0.0
    %192 = vmatprep.subr.mxu0 0.0
    %193 = vmatpush2.msra.mxu0 0.0
    %194 = vmatprep.subr.mxu0 0.0
    %195 = vmatpush2.msra.mxu0 0.0
    %196 = vmatprep.subr.mxu0 0.0
    %197 = vmatpush2.msra.mxu0 0.0
    %198 = vmatprep.subr.mxu0 0.0
    %199 = vmatpush2.msra.mxu0 0.0
    %200 = vmatprep.subr.mxu0 0.0
    %201 = vmatpush2.msra.mxu0 0.0
    %202 = vmatprep.subr.mxu0 0.0
    %203 = vmatpush2.msra.mxu0 0.0
    %204 = vmatprep.subr.mxu0 0.0
    %205 = vmatpush2.msra.mxu0 0.0
    %206 = vmatprep.subr.mxu0 0.0
    %207 = vmatpush2.msra.mxu0 0.0
    %208 = vmatprep.subr.mxu0 0.0
    %209 = vmatpush2.msra.mxu0 0.0
    %210 = vmatprep.subr.mxu0 0.0
    %211 = vmatpush2.msra.mxu0 0.0
    %212 = vmatprep.subr.mxu0 0.0
    %213 = vmatpush2.msra.mxu0 0.0
    %214 = vmatprep.mubr.f32.mxu0 0.0
    %215 = vmatmul.mubr.f32.gmra.mxu0 %v76
    %v216 = vpop.f32.mrf.mxu0
    %v217 = vadd.f32 0.0, %v216
    %v218 = vpop.f32.mrf.mxu0
    %219 = vdwg.mxu0
    %v220 = vld [vmem:[%s5] sm:$0x3]
    %v221 = vld [vmem:[%s2] sm:$0x7]
    %v222 = vld [vmem:[%s3] sm:$0xff]
    %v223 = vld [vmem:[%s3 + $0x8] sm:$0xff]
    %v224 = vld [vmem:[%s3 + $0x10] sm:$0xff]
    %v225 = vld [vmem:[%s3 + $0x18] sm:$0x3f]
    %v226 = vld [vmem:[%s4] sm:$0xff]
    %v227 = vld [vmem:[%s4 + $0x8] sm:$0x3f]
    %229 = vset.pattern.permute.xlu0 0
    %230 = vperm.xlu0 %229, %v221
    %v231 = vpop.permute.xlu0 %230
    %v233 = vmul.f32 %v145, %v231
    %v234 = vmul.f32 %v217, %v231
    %v235 = vmul.f32 %v233, %v233
    %v236 = vmul.f32 %v220, 2.0
    %v237 = vmul.f32 %v220, %v220
    %v238 = vsub.f32 %v236, %v237
    %v239 = vlaneseq
    %v240 = vshrl.u32 %v239, 7
    %v241 = vsub.s32 0, %v240
    %v242 = vrot.slane %v238, %v241
    %v243 = vmul.f32 %v235, %v242
    %v244 = vsub.f32 %v234, %v243
    %vm245 = vcmask 244736
    %v247 = vsel %vm245, %v244, 0
    %vm249 = vcmask 1045504
    %v251 = vsel %vm249, %v225, 0
    %253 = vmatprep.subr.mxu0 0.0
    %254 = vmatpush1.msra.mxu0 0.0
    %255 = vmatprep.subr.mxu0 0.0
    %256 = vmatpush1.msra.mxu0 0.0
    %257 = vmatprep.subr.mxu0 0.0
    %258 = vmatpush1.msra.mxu0 0.0
    %259 = vmatprep.subr.mxu0 0.0
    %260 = vmatpush1.msra.mxu0 0.0
    %261 = vmatprep.subr.mxu0 0.0
    %262 = vmatpush1.msra.mxu0 0.0
    %263 = vmatprep.subr.mxu0 0.0
    %264 = vmatpush1.msra.mxu0 0.0
    %265 = vmatprep.subr.mxu0 0.0
    %266 = vmatpush1.msra.mxu0 0.0
    %267 = vmatprep.subr.mxu0 0.0
    %268 = vmatpush1.msra.mxu0 0.0
    %269 = vmatprep.subr.mxu0 0.0
    %270 = vmatpush1.msra.mxu0 0.0
    %271 = vmatprep.subr.mxu0 0.0
    %272 = vmatpush1.msra.mxu0 0.0
    %273 = vmatprep.subr.mxu0 0.0
    %274 = vmatpush1.msra.mxu0 0.0
    %275 = vmatprep.subr.mxu0 0.0
    %276 = vmatpush1.msra.mxu0 0.0
    %277 = vmatprep.subr.mxu0 0.0
    %278 = vmatpush1.msra.mxu0 %v251
    %279 = vmatprep.subr.mxu0 0.0
    %280 = vmatpush1.msra.mxu0 %v224
    %281 = vmatprep.subr.mxu0 0.0
    %282 = vmatpush1.msra.mxu0 %v223
    %283 = vmatprep.subr.mxu0 0.0
    %284 = vmatpush1.msra.mxu0 %v222
    %285 = vmatprep.subr.mxu0 0.0
    %286 = vmatpush2.msra.mxu0 0.0
    %287 = vmatprep.subr.mxu0 0.0
    %288 = vmatpush2.msra.mxu0 0.0
    %289 = vmatprep.subr.mxu0 0.0
    %290 = vmatpush2.msra.mxu0 0.0
    %291 = vmatprep.subr.mxu0 0.0
    %292 = vmatpush2.msra.mxu0 0.0
    %293 = vmatprep.subr.mxu0 0.0
    %294 = vmatpush2.msra.mxu0 0.0
    %295 = vmatprep.subr.mxu0 0.0
    %296 = vmatpush2.msra.mxu0 0.0
    %297 = vmatprep.subr.mxu0 0.0
    %298 = vmatpush2.msra.mxu0 0.0
    %299 = vmatprep.subr.mxu0 0.0
    %300 = vmatpush2.msra.mxu0 0.0
    %301 = vmatprep.subr.mxu0 0.0
    %302 = vmatpush2.msra.mxu0 0.0
    %303 = vmatprep.subr.mxu0 0.0
    %304 = vmatpush2.msra.mxu0 0.0
    %305 = vmatprep.subr.mxu0 0.0
    %306 = vmatpush2.msra.mxu0 0.0
    %307 = vmatprep.subr.mxu0 0.0
    %308 = vmatpush2.msra.mxu0 0.0
    %309 = vmatprep.subr.mxu0 0.0
    %310 = vmatpush2.msra.mxu0 0.0
    %311 = vmatprep.subr.mxu0 0.0
    %312 = vmatpush2.msra.mxu0 0.0
    %313 = vmatprep.subr.mxu0 0.0
    %314 = vmatpush2.msra.mxu0 0.0
    %315 = vmatprep.subr.mxu0 0.0
    %316 = vmatpush2.msra.mxu0 0.0
    %317 = vmatprep.mubr.f32.mxu0 0.0
    %318 = vmatmul.mubr.f32.gmra.mxu0 %v247
    %v319 = vpop.f32.mrf.mxu0
    %v320 = vadd.f32 1e-05, %v319
    %v321 = vpop.f32.mrf.mxu0
    %322 = vdwg.mxu0
    %v323 = vrsqrt.pop %v320
    %vm324 = vcmask 113664
    %v326 = vsel %vm324, %v323, 0
    %v329 = vsel %vm249, %v227, 0
    %331 = vmatprep.subr.mxu0 0.0
    %332 = vmatpush1.msra.mxu0 0.0
    %333 = vmatprep.subr.mxu0 0.0
    %334 = vmatpush1.msra.mxu0 0.0
    %335 = vmatprep.subr.mxu0 0.0
    %336 = vmatpush1.msra.mxu0 0.0
    %337 = vmatprep.subr.mxu0 0.0
    %338 = vmatpush1.msra.mxu0 0.0
    %339 = vmatprep.subr.mxu0 0.0
    %340 = vmatpush1.msra.mxu0 0.0
    %341 = vmatprep.subr.mxu0 0.0
    %342 = vmatpush1.msra.mxu0 0.0
    %343 = vmatprep.subr.mxu0 0.0
    %344 = vmatpush1.msra.mxu0 0.0
    %345 = vmatprep.subr.mxu0 0.0
    %346 = vmatpush1.msra.mxu0 0.0
    %347 = vmatprep.subr.mxu0 0.0
    %348 = vmatpush1.msra.mxu0 0.0
    %349 = vmatprep.subr.mxu0 0.0
    %350 = vmatpush1.msra.mxu0 0.0
    %351 = vmatprep.subr.mxu0 0.0
    %352 = vmatpush1.msra.mxu0 0.0
    %353 = vmatprep.subr.mxu0 0.0
    %354 = vmatpush1.msra.mxu0 0.0
    %355 = vmatprep.subr.mxu0 0.0
    %356 = vmatpush1.msra.mxu0 0.0
    %357 = vmatprep.subr.mxu0 0.0
    %358 = vmatpush1.msra.mxu0 0.0
    %359 = vmatprep.subr.mxu0 0.0
    %360 = vmatpush1.msra.mxu0 %v329
    %361 = vmatprep.subr.mxu0 0.0
    %362 = vmatpush1.msra.mxu0 %v226
    %363 = vmatprep.subr.mxu0 0.0
    %364 = vmatpush2.msra.mxu0 0.0
    %365 = vmatprep.subr.mxu0 0.0
    %366 = vmatpush2.msra.mxu0 0.0
    %367 = vmatprep.subr.mxu0 0.0
    %368 = vmatpush2.msra.mxu0 0.0
    %369 = vmatprep.subr.mxu0 0.0
    %370 = vmatpush2.msra.mxu0 0.0
    %371 = vmatprep.subr.mxu0 0.0
    %372 = vmatpush2.msra.mxu0 0.0
    %373 = vmatprep.subr.mxu0 0.0
    %374 = vmatpush2.msra.mxu0 0.0
    %375 = vmatprep.subr.mxu0 0.0
    %376 = vmatpush2.msra.mxu0 0.0
    %377 = vmatprep.subr.mxu0 0.0
    %378 = vmatpush2.msra.mxu0 0.0
    %379 = vmatprep.subr.mxu0 0.0
    %380 = vmatpush2.msra.mxu0 0.0
    %381 = vmatprep.subr.mxu0 0.0
    %382 = vmatpush2.msra.mxu0 0.0
    %383 = vmatprep.subr.mxu0 0.0
    %384 = vmatpush2.msra.mxu0 0.0
    %385 = vmatprep.subr.mxu0 0.0
    %386 = vmatpush2.msra.mxu0 0.0
    %387 = vmatprep.subr.mxu0 0.0
    %388 = vmatpush2.msra.mxu0 0.0
    %389 = vmatprep.subr.mxu0 0.0
    %390 = vmatpush2.msra.mxu0 0.0
    %391 = vmatprep.subr.mxu0 0.0
    %392 = vmatpush2.msra.mxu0 0.0
    %393 = vmatprep.subr.mxu0 0.0
    %394 = vmatpush2.msra.mxu0 0.0
    %395 = vmatprep.mubr.f32.mxu0 0.0
    %396 = vmatmul.mubr.f32.gmra.mxu0 %v326
    %v397 = vpop.f32.mrf.mxu0
    %v398 = vadd.f32 0.0, %v397
    %v399 = vpop.f32.mrf.mxu0
    %400 = vdwg.mxu0
    %v401 = vlaneseq
    %v402 = vshrl.u32 %v401, 7
    %v403 = vsub.s32 0, %v402
    %v404 = vrot.slane %v220, %v403
    %v405 = vmul.f32 %v233, %v404
    %v406 = vmul.f32 %v405, %v398
    %v407 = vlaneseq
    %v408 = vshrl.u32 %v407, 7
    %v409 = vsub.s32 1, %v408
    %v410 = vrot.slane %v220, %v409
    %v411 = vsub.f32 %v410, %v406
    %vm412 = vcmask 23552
    %v414 = vsel %vm412, %v40, 0
    %v417 = vsel %vm412, %v41, 0
    %vm419 = vcmask 1042432
    %v421 = vsel %vm419, %v398, 0
    %423 = vmatprep.subr.mxu0 0.0
    %424 = vmatpush1.msra.mxu0 0.0
    %425 = vmatprep.subr.mxu0 0.0
    %426 = vmatpush1.msra.mxu0 0.0
    %427 = vmatprep.subr.mxu0 0.0
    %428 = vmatpush1.msra.mxu0 0.0
    %429 = vmatprep.subr.mxu0 0.0
    %430 = vmatpush1.msra.mxu0 0.0
    %431 = vmatprep.subr.mxu0 0.0
    %432 = vmatpush1.msra.mxu0 0.0
    %433 = vmatprep.subr.mxu0 0.0
    %434 = vmatpush1.msra.mxu0 0.0
    %435 = vmatprep.subr.mxu0 0.0
    %436 = vmatpush1.msra.mxu0 0.0
    %437 = vmatprep.subr.mxu0 0.0
    %438 = vmatpush1.msra.mxu0 0.0
    %439 = vmatprep.subr.mxu0 0.0
    %440 = vmatpush1.msra.mxu0 0.0
    %441 = vmatprep.subr.mxu0 0.0
    %442 = vmatpush1.msra.mxu0 0.0
    %443 = vmatprep.subr.mxu0 0.0
    %444 = vmatpush1.msra.mxu0 0.0
    %445 = vmatprep.subr.mxu0 0.0
    %446 = vmatpush1.msra.mxu0 0.0
    %447 = vmatprep.subr.mxu0 0.0
    %448 = vmatpush1.msra.mxu0 0.0
    %449 = vmatprep.subr.mxu0 0.0
    %450 = vmatpush1.msra.mxu0 0.0
    %451 = vmatprep.subr.mxu0 0.0
    %452 = vmatpush1.msra.mxu0 0.0
    %453 = vmatprep.subr.mxu0 0.0
    %454 = vmatpush1.msra.mxu0 %v421
    %455 = vmatprep.subr.mxu0 0.0
    %456 = vmatpush2.msra.mxu0 0.0
    %457 = vmatprep.subr.mxu0 0.0
    %458 = vmatpush2.msra.mxu0 0.0
    %459 = vmatprep.subr.mxu0 0.0
    %460 = vmatpush2.msra.mxu0 0.0
    %461 = vmatprep.subr.mxu0 0.0
    %462 = vmatpush2.msra.mxu0 0.0
    %463 = vmatprep.subr.mxu0 0.0
    %464 = vmatpush2.msra.mxu0 0.0
    %465 = vmatprep.subr.mxu0 0.0
    %466 = vmatpush2.msra.mxu0 0.0
    %467 = vmatprep.subr.mxu0 0.0
    %468 = vmatpush2.msra.mxu0 0.0
    %469 = vmatprep.subr.mxu0 0.0
    %470 = vmatpush2.msra.mxu0 0.0
    %471 = vmatprep.subr.mxu0 0.0
    %472 = vmatpush2.msra.mxu0 0.0
    %473 = vmatprep.subr.mxu0 0.0
    %474 = vmatpush2.msra.mxu0 0.0
    %475 = vmatprep.subr.mxu0 0.0
    %476 = vmatpush2.msra.mxu0 0.0
    %477 = vmatprep.subr.mxu0 0.0
    %478 = vmatpush2.msra.mxu0 0.0
    %479 = vmatprep.subr.mxu0 0.0
    %480 = vmatpush2.msra.mxu0 0.0
    %481 = vmatprep.subr.mxu0 0.0
    %482 = vmatpush2.msra.mxu0 0.0
    %483 = vmatprep.subr.mxu0 0.0
    %484 = vmatpush2.msra.mxu0 0.0
    %485 = vmatprep.subr.mxu0 0.0
    %486 = vmatpush2.msra.mxu0 0.0
    %487 = vmatprep.mubr.f32.mxu0 0.0
    %488 = vmatmul.mubr.f32.gmra.mxu0 %v414
    %v489 = vpop.f32.mrf.mxu0
    %v490 = vadd.f32 0.0, %v489
    %v491 = vpop.f32.mrf.mxu0
    %492 = vmatprep.mubr.f32.mxu0 0.0
    %493 = vmatmul.mubr.f32.gmra.mxu0 %v417
    %v494 = vpop.f32.mrf.mxu0
    %v495 = vadd.f32 0.0, %v494
    %v496 = vpop.f32.mrf.mxu0
    %497 = vdwg.mxu0
    %v499 = vsel %vm419, %v411, 0
    %501 = vmatprep.subr.mxu0 0.0
    %502 = vmatpush1.msra.mxu0 0.0
    %503 = vmatprep.subr.mxu0 0.0
    %504 = vmatpush1.msra.mxu0 0.0
    %505 = vmatprep.subr.mxu0 0.0
    %506 = vmatpush1.msra.mxu0 0.0
    %507 = vmatprep.subr.mxu0 0.0
    %508 = vmatpush1.msra.mxu0 0.0
    %509 = vmatprep.subr.mxu0 0.0
    %510 = vmatpush1.msra.mxu0 0.0
    %511 = vmatprep.subr.mxu0 0.0
    %512 = vmatpush1.msra.mxu0 0.0
    %513 = vmatprep.subr.mxu0 0.0
    %514 = vmatpush1.msra.mxu0 0.0
    %515 = vmatprep.subr.mxu0 0.0
    %516 = vmatpush1.msra.mxu0 0.0
    %517 = vmatprep.subr.mxu0 0.0
    %518 = vmatpush1.msra.mxu0 0.0
    %519 = vmatprep.subr.mxu0 0.0
    %520 = vmatpush1.msra.mxu0 0.0
    %521 = vmatprep.subr.mxu0 0.0
    %522 = vmatpush1.msra.mxu0 0.0
    %523 = vmatprep.subr.mxu0 0.0
    %524 = vmatpush1.msra.mxu0 0.0
    %525 = vmatprep.subr.mxu0 0.0
    %526 = vmatpush1.msra.mxu0 0.0
    %527 = vmatprep.subr.mxu0 0.0
    %528 = vmatpush1.msra.mxu0 0.0
    %529 = vmatprep.subr.mxu0 0.0
    %530 = vmatpush1.msra.mxu0 0.0
    %531 = vmatprep.subr.mxu0 0.0
    %532 = vmatpush1.msra.mxu0 %v499
    %533 = vmatprep.subr.mxu0 0.0
    %534 = vmatpush2.msra.mxu0 0.0
    %535 = vmatprep.subr.mxu0 0.0
    %536 = vmatpush2.msra.mxu0 0.0
    %537 = vmatprep.subr.mxu0 0.0
    %538 = vmatpush2.msra.mxu0 0.0
    %539 = vmatprep.subr.mxu0 0.0
    %540 = vmatpush2.msra.mxu0 0.0
    %541 = vmatprep.subr.mxu0 0.0
    %542 = vmatpush2.msra.mxu0 0.0
    %543 = vmatprep.subr.mxu0 0.0
    %544 = vmatpush2.msra.mxu0 0.0
    %545 = vmatprep.subr.mxu0 0.0
    %546 = vmatpush2.msra.mxu0 0.0
    %547 = vmatprep.subr.mxu0 0.0
    %548 = vmatpush2.msra.mxu0 0.0
    %549 = vmatprep.subr.mxu0 0.0
    %550 = vmatpush2.msra.mxu0 0.0
    %551 = vmatprep.subr.mxu0 0.0
    %552 = vmatpush2.msra.mxu0 0.0
    %553 = vmatprep.subr.mxu0 0.0
    %554 = vmatpush2.msra.mxu0 0.0
    %555 = vmatprep.subr.mxu0 0.0
    %556 = vmatpush2.msra.mxu0 0.0
    %557 = vmatprep.subr.mxu0 0.0
    %558 = vmatpush2.msra.mxu0 0.0
    %559 = vmatprep.subr.mxu0 0.0
    %560 = vmatpush2.msra.mxu0 0.0
    %561 = vmatprep.subr.mxu0 0.0
    %562 = vmatpush2.msra.mxu0 0.0
    %563 = vmatprep.subr.mxu0 0.0
    %564 = vmatpush2.msra.mxu0 0.0
    %565 = vmatprep.mubr.f32.mxu0 0.0
    %566 = vmatmul.mubr.f32.gmra.mxu0 %v414
    %v567 = vpop.f32.mrf.mxu0
    %v568 = vadd.f32 0.0, %v567
    %v569 = vpop.f32.mrf.mxu0
    %570 = vmatprep.mubr.f32.mxu0 0.0
    %571 = vmatmul.mubr.f32.gmra.mxu0 %v417
    %v572 = vpop.f32.mrf.mxu0
    %v573 = vadd.f32 0.0, %v572
    %v574 = vpop.f32.mrf.mxu0
    %575 = vdwg.mxu0
    %v576 = vmul.f32 %v24, %v490
    %v577 = vmul.f32 %v25, %v495
    %v578 = vadd.f32 %v576, %v568
    %v579 = vadd.f32 %v577, %v573
    %580 = vst.msk [vmem:[#allocation2] sm:$0xff] %vm245, %v578
    %581 = vst.msk [vmem:[#allocation2 + $0x8] sm:$0xff] %vm245, %v579
    // Predicated region
    $region26: #{tpu_custom_call.1} parent=1 // pred_check
      _
    $region27: #{tpu_custom_call.1} parent=1 // pred_check_branch
      %583 = sbr.rel (0) target = $region29
    $region28: #{tpu_custom_call.1} parent=1 // pred_region
      %s585 = ssub.s32 256, 256
      %586 = vsyncadd [#allocation3], %s585
      %s587 = sshll.u32 [#allocation2], 4
      %s588 = int_to_ptr.vmem [resolvable:$true] %s587
      %593 = dma.vmem_to_hbm [thread:$0]  %s588, 256, %s6, [#allocation3], 128, 128, 8
    $region29: #{tpu_custom_call.1} parent=1 // pred_fallthru
      _
    // Predicated region
    $region30: #{tpu_custom_call.1} parent=1 // pred_check
      _
    $region31: #{tpu_custom_call.1} parent=1 // pred_check_branch
      %595 = sbr.rel (0) target = $region33
    $region32: #{tpu_custom_call.1} parent=1 // pred_region
      %596 = dma.done [#allocation3], 256
    $region33: #{tpu_custom_call.1} parent=1 // pred_fallthru
      _
    %597 = vsyncpa [#allocation3], 1

</llo_original>
